<compile_context>
chip_gen: v5e
topology: v5e:2x2
jax: 0.10.0
libtpu: 0.0.40
codegen_flags: <defaults>
</compile_context>

<pallas_src>
import functools

import jax
import jax.numpy as jnp
from jax.experimental import pallas as pl
from jax.experimental.pallas import tpu as pltpu


def _round_up(x, m):
    return (x + m - 1) // m * m


def _gather_logits(idx, table_ref, tile_n, v_pad):
    """Embedding row lookup as one-hot(idx) @ table on the MXU.

    idx: (tile_n, 1) int32.  Returns (col_iota, logits) with logits
    (tile_n, v_pad) f32.  Operands are already padded to MXU-friendly sizes
    (K = N = v_pad, a multiple of 128).
    """
    col = jax.lax.broadcasted_iota(jnp.int32, (tile_n, v_pad), 1)
    onehot = (col == idx).astype(jnp.float32)                 # (tile_n, v_pad)
    logits = jnp.dot(onehot, table_ref[...],
                     preferred_element_type=jnp.float32)      # (tile_n, v_pad)
    return col, logits


def _logits_kernel(idx_ref, table_ref, logits_ref, *, tile_n, v_pad):
    """Inference path: embedding lookup only (no cross-entropy work)."""
    _, logits = _gather_logits(idx_ref[...], table_ref, tile_n, v_pad)
    logits_ref[...] = logits


def _logits_loss_kernel(idx_ref, tgt_ref, table_ref, logits_ref, tokloss_ref,
                        *, tile_n, v_pad, vocab, n_tokens, mask_rows):
    """Training path: embedding lookup + fused per-token cross-entropy."""
    col, logits = _gather_logits(idx_ref[...], table_ref, tile_n, v_pad)
    logits_ref[...] = logits

    # logsumexp over the real vocab columns only (pad columns -> -inf).
    masked = jnp.where(col < vocab, logits, -jnp.inf)
    m = jnp.max(masked, axis=-1, keepdims=True)
    lse = m + jnp.log(jnp.sum(jnp.exp(masked - m), axis=-1, keepdims=True))

    # target logit via select (no extra f32 one-hot temp).
    tgt_logit = jnp.sum(jnp.where(col == tgt_ref[...], logits, 0.0),
                        axis=-1, keepdims=True)

    per_tok = lse - tgt_logit                                  # (tile_n, 1)
    if mask_rows:
        row = (jax.lax.broadcasted_iota(jnp.int32, (tile_n, 1), 0)
               + pl.program_id(0) * tile_n)
        per_tok = jnp.where(row < n_tokens, per_tok, 0.0)
    tokloss_ref[...] = per_tok


def bigram_forward(idx, embedding_table, targets=None, *, tile_n_max=256):
    """Mirrors BiGram.forward.

    idx: (B, T) int; embedding_table: (V, V) float32.
    targets is None -> (logits (B, T, V), None)
    targets given   -> (logits (B*T, V), scalar loss)   [matches the PyTorch view]
    """
    B, T = idx.shape
    V = embedding_table.shape[0]
    N = B * T

    v_pad = _round_up(V, 128)
    tile_n = min(tile_n_max, _round_up(N, 8))
    n_pad = _round_up(N, tile_n)
    num_tiles = n_pad // tile_n

    table = embedding_table.astype(jnp.float32)
    if v_pad != V:
        table = jnp.pad(table, ((0, v_pad - V), (0, v_pad - V)))

    idx_flat = idx.reshape(N).astype(jnp.int32)
    if n_pad != N:
        idx_flat = jnp.pad(idx_flat, (0, n_pad - N))
    idx_col = idx_flat.reshape(n_pad, 1)

    idx_spec = pl.BlockSpec((tile_n, 1), lambda i: (i, 0))
    table_spec = pl.BlockSpec((v_pad, v_pad), lambda i: (0, 0))  # resident
    logits_spec = pl.BlockSpec((tile_n, v_pad), lambda i: (i, 0))
    tokloss_spec = pl.BlockSpec((tile_n, 1), lambda i: (i, 0))

    compiler_params = pltpu.CompilerParams(
        dimension_semantics=("parallel",))  # per-tile work is independent

    if targets is None:
        kernel = functools.partial(_logits_kernel, tile_n=tile_n, v_pad=v_pad)
        logits_pad = pl.pallas_call(
            kernel,
            grid=(num_tiles,),
            out_shape=jax.ShapeDtypeStruct((n_pad, v_pad), jnp.float32),
            in_specs=[idx_spec, table_spec],
            out_specs=logits_spec,
            compiler_params=compiler_params,
        )(idx_col, table)
        logits = logits_pad[:N, :V].reshape(B, T, V)
        return logits, None

    tgt_flat = targets.reshape(N).astype(jnp.int32)
    if n_pad != N:
        tgt_flat = jnp.pad(tgt_flat, (0, n_pad - N))
    tgt_col = tgt_flat.reshape(n_pad, 1)

    kernel = functools.partial(
        _logits_loss_kernel, tile_n=tile_n, v_pad=v_pad, vocab=V,
        n_tokens=N, mask_rows=(n_pad != N))
    logits_pad, tok_loss = pl.pallas_call(
        kernel,
        grid=(num_tiles,),
        out_shape=(
            jax.ShapeDtypeStruct((n_pad, v_pad), jnp.float32),
            jax.ShapeDtypeStruct((n_pad, 1), jnp.float32),
        ),
        in_specs=[idx_spec, idx_spec, table_spec],
        out_specs=(logits_spec, tokloss_spec),
        compiler_params=compiler_params,
    )(idx_col, tgt_col, table)

    # PyTorch module returns the flattened (B*T, C) view when targets is given.
    logits = logits_pad[:N, :V]
    loss = jnp.sum(tok_loss) / N
    return logits, loss


if __name__ == "__main__":
    key = jax.random.PRNGKey(0)
    k_table, k_idx, k_tgt = jax.random.split(key, 3)

    vocab_size = 32
    B, T = 2, 8

    # nn.Embedding default init ~ N(0, 1)
    embedding_table = jax.random.normal(
        k_table, (vocab_size, vocab_size), dtype=jnp.float32)
    idx = jax.random.randint(k_idx, (B, T), 0, vocab_size, dtype=jnp.int32)
    targets = jax.random.randint(k_tgt, (B, T), 0, vocab_size, dtype=jnp.int32)

    # --- with targets -> (flattened logits, scalar loss), like the module ---
    logits_flat, loss = bigram_forward(idx, embedding_table, targets)
    jax.block_until_ready((logits_flat, loss))

    ref_logits = embedding_table[idx]                       # (B, T, V)
    ref_flat = ref_logits.reshape(B * T, vocab_size)
    ref_ls = jax.nn.log_softmax(ref_flat, axis=-1)
    ref_loss = -jnp.mean(ref_ls[jnp.arange(B * T), targets.reshape(-1)])
    assert logits_flat.shape == (B * T, vocab_size)
    assert jnp.allclose(logits_flat, ref_flat, atol=1e-5)
    assert jnp.allclose(loss, ref_loss, atol=1e-5, rtol=1e-5)

    # --- without targets -> ((B, T, V) logits, None) ---
    logits_only, loss_none = bigram_forward(idx, embedding_table, None)
    jax.block_until_ready(logits_only)
    assert logits_only.shape == (B, T, vocab_size)
    assert jnp.allclose(logits_only, ref_logits, atol=1e-5)
    assert loss_none is None

    # --- shape that exercises multiple grid tiles + row masking ---
    B2, T2 = 4, 100   # N = 400 -> tile_n = 256, n_pad = 512, 2 grid steps
    idx2 = jax.random.randint(k_idx, (B2, T2), 0, vocab_size, dtype=jnp.int32)
    tgt2 = jax.random.randint(k_tgt, (B2, T2), 0, vocab_size, dtype=jnp.int32)
    logits2, loss2 = bigram_forward(idx2, embedding_table, tgt2)
    jax.block_until_ready((logits2, loss2))
    ref2 = embedding_table[idx2].reshape(B2 * T2, vocab_size)
    ref_ls2 = jax.nn.log_softmax(ref2, axis=-1)
    ref_loss2 = -jnp.mean(ref_ls2[jnp.arange(B2 * T2), tgt2.reshape(-1)])
    assert jnp.allclose(logits2, ref2, atol=1e-5)
    assert jnp.allclose(loss2, ref_loss2, atol=1e-5, rtol=1e-5)

    print("KERNEL_OK")
</pallas_src>

<mosaic_0001>
module attributes {stable_mosaic.version = 11 : i64} {
  func.func @_logits_loss_kernel(%arg0: i32, %arg1: memref<16x1xi32, #tpu.memory_space<vmem>>, %arg2: memref<16x1xi32, #tpu.memory_space<vmem>>, %arg3: memref<128x128xf32, #tpu.memory_space<vmem>>, %arg4: memref<16x128xf32, #tpu.memory_space<vmem>>, %arg5: memref<16x1xf32, #tpu.memory_space<vmem>>) attributes {dimension_semantics = [#tpu.dimension_semantics<parallel>], iteration_bounds = array<i64: 1>, scalar_prefetch = 0 : i64, scratch_operands = 0 : i64, tpu.core_type = #tpu.core_type<tc>, window_params = [{transform_indices = @transform_0, window_bounds = array<i64: 16, 1>}, {transform_indices = @transform_1, window_bounds = array<i64: 16, 1>}, {pipeline_mode = #tpu.pipeline_mode<synchronous>, transform_indices = @transform_2, window_bounds = array<i64: 128, 128>}, {transform_indices = @transform_3, window_bounds = array<i64: 16, 128>}, {transform_indices = @transform_4, window_bounds = array<i64: 16, 1>}]} {
    %c0 = arith.constant 0 : index
    %c0_0 = arith.constant 0 : index
    %0 = vector.load %arg1[%c0, %c0_0] : memref<16x1xi32, #tpu.memory_space<vmem>>, vector<16x1xi32>
    %1 = tpu.iota {dimensions = array<i32: 1>} : vector<16x128xi32>
    %2 = vector.broadcast %0 : vector<16x1xi32> to vector<16x128xi32>
    %3 = arith.cmpi eq, %1, %2 : vector<16x128xi32>
    %4 = arith.extui %3 : vector<16x128xi1> to vector<16x128xi32>
    %5 = arith.sitofp %4 : vector<16x128xi32> to vector<16x128xf32>
    %c0_1 = arith.constant 0 : index
    %c0_2 = arith.constant 0 : index
    %6 = vector.load %arg3[%c0_1, %c0_2] : memref<128x128xf32, #tpu.memory_space<vmem>>, vector<128x128xf32>
    %cst = arith.constant dense<0.000000e+00> : vector<16x128xf32>
    %7 = tpu.matmul %5, %6, %cst {dimension_numbers = #tpu.dot_dimension_numbers<[1], [0], [0], [1], [0, 0, 1, 1], [], []>} : vector<16x128xf32>, vector<128x128xf32>, vector<16x128xf32> -> vector<16x128xf32>
    %c0_3 = arith.constant 0 : index
    %c0_4 = arith.constant 0 : index
    %8 = vector.load %arg4[%c0_3, %c0_4] : memref<16x128xf32, #tpu.memory_space<vmem>>, vector<16x128xf32>
    tpu.vector_store %arg4[%c0_3, %c0_4], %7 {strides = array<i32>} : memref<16x128xf32, #tpu.memory_space<vmem>>, vector<16x128xf32>,
    %c32_i32 = arith.constant 32 : i32
    %9 = vector.broadcast %c32_i32 : i32 to vector<16x128xi32>
    %10 = arith.cmpi slt, %1, %9 : vector<16x128xi32>
    %cst_5 = arith.constant 0xFF800000 : f32
    %11 = vector.broadcast %cst_5 : f32 to vector<16x128xf32>
    %12 = arith.select %10, %7, %11 : vector<16x128xi1>, vector<16x128xf32>
    %cst_6 = arith.constant dense<0xFF800000> : vector<16xf32>
    %13 = vector.multi_reduction <maximumf>, %12, %cst_6 [1] : vector<16x128xf32> to vector<16xf32>
    %14 = vector.shape_cast %13 : vector<16xf32> to vector<16x1xf32>
    %15 = vector.broadcast %14 : vector<16x1xf32> to vector<16x128xf32>
    %16 = arith.subf %12, %15 : vector<16x128xf32>
    %17 = math.exp %16 : vector<16x128xf32>
    %cst_7 = arith.constant dense<0.000000e+00> : vector<16xf32>
    %18 = vector.multi_reduction <add>, %17, %cst_7 [1] : vector<16x128xf32> to vector<16xf32>
    %19 = vector.shape_cast %18 : vector<16xf32> to vector<16x1xf32>
    %20 = math.log %19 : vector<16x1xf32>
    %21 = arith.addf %14, %20 : vector<16x1xf32>
    %c0_8 = arith.constant 0 : index
    %c0_9 = arith.constant 0 : index
    %22 = vector.load %arg2[%c0_8, %c0_9] : memref<16x1xi32, #tpu.memory_space<vmem>>, vector<16x1xi32>
    %23 = vector.broadcast %22 : vector<16x1xi32> to vector<16x128xi32>
    %24 = arith.cmpi eq, %1, %23 : vector<16x128xi32>
    %cst_10 = arith.constant 0.000000e+00 : f32
    %25 = vector.broadcast %cst_10 : f32 to vector<16x128xf32>
    %26 = arith.select %24, %7, %25 : vector<16x128xi1>, vector<16x128xf32>
    %cst_11 = arith.constant dense<0.000000e+00> : vector<16xf32>
    %27 = vector.multi_reduction <add>, %26, %cst_11 [1] : vector<16x128xf32> to vector<16xf32>
    %28 = vector.shape_cast %27 : vector<16xf32> to vector<16x1xf32>
    %29 = arith.subf %21, %28 : vector<16x1xf32>
    %c0_12 = arith.constant 0 : index
    %c0_13 = arith.constant 0 : index
    %30 = vector.load %arg5[%c0_12, %c0_13] : memref<16x1xf32, #tpu.memory_space<vmem>>, vector<16x1xf32>
    tpu.vector_store %arg5[%c0_12, %c0_13], %29 {strides = array<i32>} : memref<16x1xf32, #tpu.memory_space<vmem>>, vector<16x1xf32>,
    return
  }
  func.func @transform_0(%arg0: i32) -> (i32, i32) {
    %c0_i32 = arith.constant 0 : i32
    %c0_i32_0 = arith.constant 0 : i32
    return %arg0, %c0_i32 : i32, i32
  }
  func.func @transform_1(%arg0: i32) -> (i32, i32) {
    %c0_i32 = arith.constant 0 : i32
    %c0_i32_0 = arith.constant 0 : i32
    return %arg0, %c0_i32 : i32, i32
  }
  func.func @transform_2(%arg0: i32) -> (i32, i32) {
    %c0_i32 = arith.constant 0 : i32
    %c0_i32_0 = arith.constant 0 : i32
    %c0_i32_1 = arith.constant 0 : i32
    return %c0_i32, %c0_i32_0 : i32, i32
  }
  func.func @transform_3(%arg0: i32) -> (i32, i32) {
    %c0_i32 = arith.constant 0 : i32
    %c0_i32_0 = arith.constant 0 : i32
    return %arg0, %c0_i32 : i32, i32
  }
  func.func @transform_4(%arg0: i32) -> (i32, i32) {
    %c0_i32 = arith.constant 0 : i32
    %c0_i32_0 = arith.constant 0 : i32
    return %arg0, %c0_i32 : i32, i32
  }
}

</mosaic_0001>

<llo_original>
// kernel: tpu_custom_call.1
$region0: #{tpu_custom_call.1}
  #allocation0 [shape = 'u32[]', space=smem, size = 0x4, offset = 0x4, fixed_abs, tag = 'smem constant byte address 0x4 - core index']
  #allocation1 [shape = 'u32[72,128]{1,0:T(1,128)}', space=vmem, size = 0x9000, scoped, tag = 'internal scratch']
  %s0 = inlined_call_operand.vmem [shape: s32[16,1], index: 0, kind: input, shape index: {}]
  %s1 = inlined_call_operand.vmem [shape: s32[16,1], index: 1, kind: input, shape index: {}]
  %s2 = inlined_call_operand.hbm [shape: f32[128,128], index: 2, kind: input, shape index: {}]
  %s3 = inlined_call_operand.hbm [shape: f32[16,128], index: 3, kind: output, shape index: {0}]
  %s4 = inlined_call_operand.vmem [shape: f32[16,1], index: 4, kind: output, shape index: {1}]
  %5 = xla_tuple %s3, %s4
  %s6 = sld [smem:[#allocation0]]
  $region34: #{tpu_custom_call.1} parent=0
    _
  %s8 = ssub.s32 1, %s6
  %s9 = scalar_select 0, %s8, %s6
  $region1: #{tpu_custom_call.1} parent=0
    #allocation2 [shape = 'u8[65536]{0}', space=vmem, size = 0x10000, scoped, tag = 'input window, operand 2, single buffered']
    #allocation3 [shape = 's32[1]{0}', space=sflag, size = 0x4, scoped, tag = 'scoped memory for tpu_custom_call.1']
    #allocation4 [shape = 's32[1]{0}', space=sflag, size = 0x4, scoped, tag = 'scoped memory for tpu_custom_call.1']
    #allocation5 [shape = 'u8[8192]{0}', space=vmem, size = 0x2000, scoped, tag = 'output window, operand 0, single buffered']
    %10 = vsyncpa [#allocation3], 0
    %11 = vsyncpa [#allocation4], 0
    // Predicated region
    $region2: #{tpu_custom_call.1} parent=1 // pred_check
      _
    $region3: #{tpu_custom_call.1} parent=1 // pred_check_branch
      %13 = sbr.rel (0) target = $region5
    $region4: #{tpu_custom_call.1} parent=1 // pred_region
      _
    $region5: #{tpu_custom_call.1} parent=1 // pred_fallthru
      _
    // Predicated region
    $region6: #{tpu_custom_call.1} parent=1 // pred_check
      _
    $region7: #{tpu_custom_call.1} parent=1 // pred_check_branch
      %15 = sbr.rel (0) target = $region9
    $region8: #{tpu_custom_call.1} parent=1 // pred_region
      _
    $region9: #{tpu_custom_call.1} parent=1 // pred_fallthru
      _
    // Predicated region
    $region10: #{tpu_custom_call.1} parent=1 // pred_check
      _
    $region11: #{tpu_custom_call.1} parent=1 // pred_check_branch
      %17 = sbr.rel (0) target = $region13
    $region12: #{tpu_custom_call.1} parent=1 // pred_region
      %19 = vsyncadd [#allocation3], 0
      %s20 = sshll.u32 %s2, 4
      %s21 = int_to_ptr.hbm [resolvable:$true] %s20
      %s22 = sshll.u32 [#allocation2], 4
      %s23 = int_to_ptr.vmem [resolvable:$true] %s22
      %28 = dma.hbm_to_vmem [thread:$0]  %s21, 2048, %s23, [#allocation3], 128, 128, 8
    $region13: #{tpu_custom_call.1} parent=1 // pred_fallthru
      _
    // Predicated region
    $region14: #{tpu_custom_call.1} parent=1 // pred_check
      _
    $region15: #{tpu_custom_call.1} parent=1 // pred_check_branch
      %30 = sbr.rel (0) target = $region17
    $region16: #{tpu_custom_call.1} parent=1 // pred_region
      %32 = dma.done [#allocation3], 2048
    $region17: #{tpu_custom_call.1} parent=1 // pred_fallthru
      _
    %v33 = vld [vmem:[%s0] sm:$0xff]
    %v34 = vld [vmem:[%s0 + $0x8] sm:$0xff]
    %v35 = vlaneseq
    %v36 = vand.u32 %v35, 127
    %37 = vset.pattern.permute.xlu0 0
    %38 = vperm.xlu0 %37, %v33
    %v39 = vpop.permute.xlu0 %38
    %40 = vset.pattern.permute.xlu0 0
    %41 = vperm.xlu0 %40, %v34
    %v42 = vpop.permute.xlu0 %41
    %vm43 = vcmp.eq.s32.totalorder %v36, %v39
    %vm44 = vcmp.eq.s32.totalorder %v36, %v42
    %v45 = vsel %vm43, 1, 0
    %v46 = vsel %vm44, 1, 0
    %v47 = vcvt.s32.f32 %v45
    %v48 = vcvt.s32.f32 %v46
    %v49 = vld [vmem:[#allocation2] sm:$0xff]
    %v50 = vld [vmem:[#allocation2 + $0x8] sm:$0xff]
    %v51 = vld [vmem:[#allocation2 + $0x10] sm:$0xff]
    %v52 = vld [vmem:[#allocation2 + $0x18] sm:$0xff]
    %v53 = vld [vmem:[#allocation2 + $0x20] sm:$0xff]
    %v54 = vld [vmem:[#allocation2 + $0x28] sm:$0xff]
    %v55 = vld [vmem:[#allocation2 + $0x30] sm:$0xff]
    %v56 = vld [vmem:[#allocation2 + $0x38] sm:$0xff]
    %v57 = vld [vmem:[#allocation2 + $0x40] sm:$0xff]
    %v58 = vld [vmem:[#allocation2 + $0x48] sm:$0xff]
    %v59 = vld [vmem:[#allocation2 + $0x50] sm:$0xff]
    %v60 = vld [vmem:[#allocation2 + $0x58] sm:$0xff]
    %v61 = vld [vmem:[#allocation2 + $0x60] sm:$0xff]
    %v62 = vld [vmem:[#allocation2 + $0x68] sm:$0xff]
    %v63 = vld [vmem:[#allocation2 + $0x70] sm:$0xff]
    %v64 = vld [vmem:[#allocation2 + $0x78] sm:$0xff]
    %65 = vmatpush.msra.mxu0 %v64
    %66 = vmatpush.msra.mxu0 %v63
    %67 = vmatpush.msra.mxu0 %v62
    %68 = vmatpush.msra.mxu0 %v61
    %69 = vmatpush.msra.mxu0 %v60
    %70 = vmatpush.msra.mxu0 %v59
    %71 = vmatpush.msra.mxu0 %v58
    %72 = vmatpush.msra.mxu0 %v57
    %73 = vmatpush.msra.mxu0 %v56
    %74 = vmatpush.msra.mxu0 %v55
    %75 = vmatpush.msra.mxu0 %v54
    %76 = vmatpush.msra.mxu0 %v53
    %77 = vmatpush.msra.mxu0 %v52
    %78 = vmatpush.msra.mxu0 %v51
    %79 = vmatpush.msra.mxu0 %v50
    %80 = vmatpush.msra.mxu0 %v49
    %81 = vmatmul.f32.gmra.mxu0 %v47
    %v82 = vpop.f32.mrf.mxu0
    %v83 = vadd.f32 0.0, %v82
    %84 = vmatmul.f32.gmra.mxu0 %v48
    %v85 = vpop.f32.mrf.mxu0
    %v86 = vadd.f32 0.0, %v85
    %87 = vdwg.mxu0
    %88 = vst [vmem:[#allocation5] sm:$0xff] %v83
    %89 = vst [vmem:[#allocation5 + $0x8] sm:$0xff] %v86
    %vm90 = vcmp.lt.s32.totalorder %v36, 32
    %v91 = vsel %vm90, %v83, -inf
    %v92 = vsel %vm90, %v86, -inf
    %93 = vmax.xlane.f32.xlu0 %v91
    %v94 = vpop.xlane.xlu0 %93
    %95 = vmax.xlane.f32.xlu0 %v92
    %v96 = vpop.xlane.xlu0 %95
    %v97 = vsub.f32 %v91, %v94
    %v98 = vsub.f32 %v92, %v96
    %v99 = vmul.f32 %v97, 1.442695
    %v100 = vpow.pop %v99
    %v101 = vmul.f32 %v98, 1.442695
    %v102 = vpow.pop %v101
    %103 = vadd.xlane.f32.xlu0 %v100
    %v104 = vpop.xlane.xlu0 %103
    %105 = vadd.xlane.f32.xlu0 %v102
    %v106 = vpop.xlane.xlu0 %105
    %v107 = vlog2.pop %v104
    %v108 = vmul.f32 %v107, 0.6931472
    %v109 = vlog2.pop %v106
    %v110 = vmul.f32 %v109, 0.6931472
    %v111 = vadd.f32 %v94, %v108
    %v112 = vadd.f32 %v96, %v110
    %v113 = vld [vmem:[%s1] sm:$0xff]
    %v114 = vld [vmem:[%s1 + $0x8] sm:$0xff]
    %115 = vset.pattern.permute.xlu0 0
    %116 = vperm.xlu0 %115, %v113
    %v117 = vpop.permute.xlu0 %116
    %118 = vset.pattern.permute.xlu0 0
    %119 = vperm.xlu0 %118, %v114
    %v120 = vpop.permute.xlu0 %119
    %vm121 = vcmp.eq.s32.totalorder %v36, %v117
    %vm122 = vcmp.eq.s32.totalorder %v36, %v120
    %v123 = vsel %vm121, %v83, 0.0
    %v124 = vsel %vm122, %v86, 0.0
    %125 = vadd.xlane.f32.xlu0 %v123
    %v126 = vpop.xlane.xlu0 %125
    %127 = vadd.xlane.f32.xlu0 %v124
    %v128 = vpop.xlane.xlu0 %127
    %v129 = vsub.f32 %v111, %v126
    %v130 = vsub.f32 %v112, %v128
    %vm131 = vcmask 7168
    %132 = vst.msk [vmem:[%s4] sm:$0xff] %vm131, %v129
    %133 = vst.msk [vmem:[%s4 + $0x8] sm:$0xff] %vm131, %v130
    // Predicated region
    $region18: #{tpu_custom_call.1} parent=1 // pred_check
      _
    $region19: #{tpu_custom_call.1} parent=1 // pred_check_branch
      %135 = sbr.rel (0) target = $region21
    $region20: #{tpu_custom_call.1} parent=1 // pred_region
      %137 = vsyncadd [#allocation4], 0
      %s138 = sshll.u32 [#allocation5], 4
      %s139 = int_to_ptr.vmem [resolvable:$true] %s138
      %s140 = sshll.u32 %s3, 4
      %s141 = int_to_ptr.hbm [resolvable:$true] %s140
      %146 = dma.vmem_to_hbm [thread:$0]  %s139, 256, %s141, [#allocation4], 128, 128, 8
    $region21: #{tpu_custom_call.1} parent=1 // pred_fallthru
      _
    // Predicated region
    $region22: #{tpu_custom_call.1} parent=1 // pred_check
      _
    $region23: #{tpu_custom_call.1} parent=1 // pred_check_branch
      %148 = sbr.rel (0) target = $region25
    $region24: #{tpu_custom_call.1} parent=1 // pred_region
      _
    $region25: #{tpu_custom_call.1} parent=1 // pred_fallthru
      _
    // Predicated region
    $region26: #{tpu_custom_call.1} parent=1 // pred_check
      _
    $region27: #{tpu_custom_call.1} parent=1 // pred_check_branch
      %150 = sbr.rel (0) target = $region29
    $region28: #{tpu_custom_call.1} parent=1 // pred_region
      %152 = dma.done [#allocation4], 256
    $region29: #{tpu_custom_call.1} parent=1 // pred_fallthru
      _
    // Predicated region
    $region30: #{tpu_custom_call.1} parent=1 // pred_check
      _
    $region31: #{tpu_custom_call.1} parent=1 // pred_check_branch
      %154 = sbr.rel (0) target = $region33
    $region32: #{tpu_custom_call.1} parent=1 // pred_region
      _
    $region33: #{tpu_custom_call.1} parent=1 // pred_fallthru
      _
    %155 = vsyncpa [#allocation3], 1
    %156 = vsyncpa [#allocation4], 1

</llo_original>
